<compile_context>
chip_gen: v7x
topology: tpu7x:2x2x1
jax: 0.10.0
libtpu: 0.0.40
codegen_flags: <defaults>
</compile_context>

<pallas_src>
import jax
import jax.numpy as jnp
from jax.experimental import pallas as pl
from jax.experimental.pallas import tpu as pltpu


def _critic_kernel(obs_ref, w1_ref, b1_ref, w2_ref, b2_ref, w3_ref, b3_ref,
                   out_ref):
    # obs_ref: (TB, obs_dim) f32 batch tile (streamed)
    # w1/w2  : bf16 (obs_dim, h1) / (h1, h2)   -- MXU operands, VMEM-resident
    # b1/b2  : f32  (1, h1) / (1, h2)
    # w3     : f32  (1, h2) row vector          -- final layer runs on the VPU
    # b3     : f32  (1, 1)
    # out_ref: (1, TB) lane-dense value row for this batch tile
    x = obs_ref[...].astype(jnp.bfloat16)

    # Layer 1: Linear + tanh (bf16 MXU operands, f32 accumulate, f32 elementwise)
    h = jnp.dot(x, w1_ref[...], preferred_element_type=jnp.float32)
    h = jnp.tanh(h + b1_ref[...])

    # Layer 2: Linear + tanh
    h = jnp.dot(h.astype(jnp.bfloat16), w2_ref[...],
                preferred_element_type=jnp.float32)
    h = jnp.tanh(h + b2_ref[...])

    # Output layer Linear(h2, 1): an N=1 matmul wastes a full MXU pass, so do it
    # as a VPU multiply + XLU lane reduce and write batch along the lane axis.
    v = jnp.sum(h * w3_ref[...], axis=-1)                    # (TB,)
    out_ref[...] = (v[None, :] + b3_ref[...]).astype(out_ref.dtype)


def _round_up(x, m):
    return (x + m - 1) // m * m


def amg_critic_forward(obs, params, *, block_b=512):
    """obs: (B, obs_dim) float32. Returns value of shape (B,) (squeeze of last dim)."""
    w1, b1, w2, b2, w3, b3 = params
    B, obs_dim = obs.shape
    h2 = w2.shape[1]

    # Batch tile: multiple of 8 sublanes; cap at block_b (multiple of 256 for MXU fill).
    if B <= block_b:
        TB = _round_up(B, 8)
    else:
        TB = block_b
    Bp = _round_up(B, TB)
    if Bp != B:
        obs = jnp.pad(obs, ((0, Bp - B), (0, 0)))

    grid = (Bp // TB,)

    # MXU operands in bf16 (cast once here; they stay VMEM-resident in-kernel).
    w1b = w1.astype(jnp.bfloat16)
    w2b = w2.astype(jnp.bfloat16)
    # Final layer stays on the VPU in f32; feed w3 as a (1, h2) row vector.
    w3r = jnp.reshape(w3, (1, h2))

    # Weights/biases: full-array blocks with a constant block index -> fetched
    # once, kept resident across the batch grid.
    resident = lambda a: pl.BlockSpec(a.shape, lambda i: (0,) * a.ndim)

    out = pl.pallas_call(
        _critic_kernel,
        out_shape=jax.ShapeDtypeStruct((1, Bp), jnp.float32),
        grid=grid,
        in_specs=[
            pl.BlockSpec((TB, obs_dim), lambda i: (i, 0)),   # streamed batch tiles
            resident(w1b), resident(b1),
            resident(w2b), resident(b2),
            resident(w3r), resident(b3),
        ],
        out_specs=pl.BlockSpec((1, TB), lambda i: (0, i)),   # lane-dense value row
        compiler_params=pltpu.CompilerParams(
            dimension_semantics=("parallel",),               # megacore on v7x
        ),
    )(obs, w1b, b1, w2b, b2, w3r, b3)

    # torch.squeeze(..., -1) and drop batch padding.
    return out[0, :B]


def init_params(key, obs_dim, hidden_sizes):
    """Deterministic init mimicking nn.Linear's uniform(-1/sqrt(fan_in), +) init.

    Weights are stored transposed relative to torch: shape (in, out).
    Biases are stored as (1, out) for clean broadcasting in the kernel.
    """
    sizes = [obs_dim] + list(hidden_sizes) + [1]
    params = []
    for j in range(len(sizes) - 1):
        fan_in, fan_out = sizes[j], sizes[j + 1]
        key, kw, kb = jax.random.split(key, 3)
        bound = 1.0 / jnp.sqrt(fan_in)
        w = jax.random.uniform(kw, (fan_in, fan_out), jnp.float32,
                               minval=-bound, maxval=bound)
        b = jax.random.uniform(kb, (1, fan_out), jnp.float32,
                               minval=-bound, maxval=bound)
        params += [w, b]
    return tuple(params)


def _reference(obs, params):
    w1, b1, w2, b2, w3, b3 = params
    h = jnp.tanh(obs @ w1 + b1)
    h = jnp.tanh(h @ w2 + b2)
    return jnp.squeeze(h @ w3 + b3, -1)


if __name__ == "__main__":
    key = jax.random.PRNGKey(0)

    obs_dim = 16
    hidden_sizes = (32, 32)

    key, k_obs, k_p, k_obs2 = jax.random.split(key, 4)
    params = init_params(k_p, obs_dim, hidden_sizes)

    # Small demo batch (single tile, padded up to 8 sublanes).
    B = 8
    obs = jax.random.normal(k_obs, (B, obs_dim), jnp.float32)
    value = jax.block_until_ready(amg_critic_forward(obs, params))
    ref = _reference(obs, params)
    assert value.shape == (B,)
    # bf16 MXU operands -> loosened tolerance vs the f32 reference.
    assert jnp.allclose(value, ref, atol=2e-2, rtol=2e-2), "mismatch vs reference (B=8)"

    # Exercise the multi-tile grid + batch-padding path.
    B2 = 1100
    obs2 = jax.random.normal(k_obs2, (B2, obs_dim), jnp.float32)
    value2 = jax.block_until_ready(amg_critic_forward(obs2, params))
    ref2 = _reference(obs2, params)
    assert value2.shape == (B2,)
    assert jnp.allclose(value2, ref2, atol=2e-2, rtol=2e-2), "mismatch vs reference (B=1100)"

    print("KERNEL_OK")
</pallas_src>

<mosaic_0001>
module attributes {stable_mosaic.version = 11 : i64} {
  func.func @_critic_kernel(%arg0: i32, %arg1: memref<8x16xf32, #tpu.memory_space<vmem>>, %arg2: memref<16x32xbf16, #tpu.memory_space<vmem>>, %arg3: memref<1x32xf32, #tpu.memory_space<vmem>>, %arg4: memref<32x32xbf16, #tpu.memory_space<vmem>>, %arg5: memref<1x32xf32, #tpu.memory_space<vmem>>, %arg6: memref<1x32xf32, #tpu.memory_space<vmem>>, %arg7: memref<1x1xf32, #tpu.memory_space<vmem>>, %arg8: memref<1x8xf32, #tpu.memory_space<vmem>>) attributes {dimension_semantics = [#tpu.dimension_semantics<parallel>], iteration_bounds = array<i64: 1>, scalar_prefetch = 0 : i64, scratch_operands = 0 : i64, tpu.core_type = #tpu.core_type<tc>, window_params = [{transform_indices = @transform_0, window_bounds = array<i64: 8, 16>}, {pipeline_mode = #tpu.pipeline_mode<synchronous>, transform_indices = @transform_1, window_bounds = array<i64: 16, 32>}, {pipeline_mode = #tpu.pipeline_mode<synchronous>, transform_indices = @transform_2, window_bounds = array<i64: 1, 32>}, {pipeline_mode = #tpu.pipeline_mode<synchronous>, transform_indices = @transform_3, window_bounds = array<i64: 32, 32>}, {pipeline_mode = #tpu.pipeline_mode<synchronous>, transform_indices = @transform_4, window_bounds = array<i64: 1, 32>}, {pipeline_mode = #tpu.pipeline_mode<synchronous>, transform_indices = @transform_5, window_bounds = array<i64: 1, 32>}, {pipeline_mode = #tpu.pipeline_mode<synchronous>, transform_indices = @transform_6, window_bounds = array<i64: 1, 1>}, {transform_indices = @transform_7, window_bounds = array<i64: 1, 8>}]} {
    %c0 = arith.constant 0 : index
    %c0_0 = arith.constant 0 : index
    %0 = vector.load %arg1[%c0, %c0_0] : memref<8x16xf32, #tpu.memory_space<vmem>>, vector<8x16xf32>
    %1 = arith.truncf %0 : vector<8x16xf32> to vector<8x16xbf16>
    %c0_1 = arith.constant 0 : index
    %c0_2 = arith.constant 0 : index
    %2 = vector.load %arg2[%c0_1, %c0_2] : memref<16x32xbf16, #tpu.memory_space<vmem>>, vector<16x32xbf16>
    %cst = arith.constant dense<0.000000e+00> : vector<8x32xf32>
    %3 = tpu.matmul %1, %2, %cst {dimension_numbers = #tpu.dot_dimension_numbers<[1], [0], [0], [1], [0, 0, 1, 1], [], []>} : vector<8x16xbf16>, vector<16x32xbf16>, vector<8x32xf32> -> vector<8x32xf32>
    %c0_3 = arith.constant 0 : index
    %c0_4 = arith.constant 0 : index
    %4 = vector.load %arg3[%c0_3, %c0_4] : memref<1x32xf32, #tpu.memory_space<vmem>>, vector<1x32xf32>
    %5 = vector.broadcast %4 : vector<1x32xf32> to vector<8x32xf32>
    %6 = arith.addf %3, %5 : vector<8x32xf32>
    %7 = math.tanh %6 : vector<8x32xf32>
    %8 = arith.truncf %7 : vector<8x32xf32> to vector<8x32xbf16>
    %c0_5 = arith.constant 0 : index
    %c0_6 = arith.constant 0 : index
    %9 = vector.load %arg4[%c0_5, %c0_6] : memref<32x32xbf16, #tpu.memory_space<vmem>>, vector<32x32xbf16>
    %cst_7 = arith.constant dense<0.000000e+00> : vector<8x32xf32>
    %10 = tpu.matmul %8, %9, %cst_7 {dimension_numbers = #tpu.dot_dimension_numbers<[1], [0], [0], [1], [0, 0, 1, 1], [], []>} : vector<8x32xbf16>, vector<32x32xbf16>, vector<8x32xf32> -> vector<8x32xf32>
    %c0_8 = arith.constant 0 : index
    %c0_9 = arith.constant 0 : index
    %11 = vector.load %arg5[%c0_8, %c0_9] : memref<1x32xf32, #tpu.memory_space<vmem>>, vector<1x32xf32>
    %12 = vector.broadcast %11 : vector<1x32xf32> to vector<8x32xf32>
    %13 = arith.addf %10, %12 : vector<8x32xf32>
    %14 = math.tanh %13 : vector<8x32xf32>
    %c0_10 = arith.constant 0 : index
    %c0_11 = arith.constant 0 : index
    %15 = vector.load %arg6[%c0_10, %c0_11] : memref<1x32xf32, #tpu.memory_space<vmem>>, vector<1x32xf32>
    %16 = vector.broadcast %15 : vector<1x32xf32> to vector<8x32xf32>
    %17 = arith.mulf %14, %16 : vector<8x32xf32>
    %cst_12 = arith.constant dense<0.000000e+00> : vector<8xf32>
    %18 = vector.multi_reduction <add>, %17, %cst_12 [1] : vector<8x32xf32> to vector<8xf32>
    %19 = vector.shape_cast %18 : vector<8xf32> to vector<1x8xf32>
    %c0_13 = arith.constant 0 : index
    %c0_14 = arith.constant 0 : index
    %20 = vector.load %arg7[%c0_13, %c0_14] : memref<1x1xf32, #tpu.memory_space<vmem>>, vector<1x1xf32>
    %21 = vector.broadcast %20 : vector<1x1xf32> to vector<1x8xf32>
    %22 = arith.addf %19, %21 : vector<1x8xf32>
    %c0_15 = arith.constant 0 : index
    %c0_16 = arith.constant 0 : index
    %23 = vector.load %arg8[%c0_15, %c0_16] : memref<1x8xf32, #tpu.memory_space<vmem>>, vector<1x8xf32>
    tpu.vector_store %arg8[%c0_15, %c0_16], %22 {strides = array<i32>} : memref<1x8xf32, #tpu.memory_space<vmem>>, vector<1x8xf32>,
    return
  }
  func.func @transform_0(%arg0: i32) -> (i32, i32) {
    %c0_i32 = arith.constant 0 : i32
    %c0_i32_0 = arith.constant 0 : i32
    return %arg0, %c0_i32 : i32, i32
  }
  func.func @transform_1(%arg0: i32) -> (i32, i32) {
    %c0_i32 = arith.constant 0 : i32
    %c0_i32_0 = arith.constant 0 : i32
    %c0_i32_1 = arith.constant 0 : i32
    return %c0_i32, %c0_i32_0 : i32, i32
  }
  func.func @transform_2(%arg0: i32) -> (i32, i32) {
    %c0_i32 = arith.constant 0 : i32
    %c0_i32_0 = arith.constant 0 : i32
    %c0_i32_1 = arith.constant 0 : i32
    return %c0_i32, %c0_i32_0 : i32, i32
  }
  func.func @transform_3(%arg0: i32) -> (i32, i32) {
    %c0_i32 = arith.constant 0 : i32
    %c0_i32_0 = arith.constant 0 : i32
    %c0_i32_1 = arith.constant 0 : i32
    return %c0_i32, %c0_i32_0 : i32, i32
  }
  func.func @transform_4(%arg0: i32) -> (i32, i32) {
    %c0_i32 = arith.constant 0 : i32
    %c0_i32_0 = arith.constant 0 : i32
    %c0_i32_1 = arith.constant 0 : i32
    return %c0_i32, %c0_i32_0 : i32, i32
  }
  func.func @transform_5(%arg0: i32) -> (i32, i32) {
    %c0_i32 = arith.constant 0 : i32
    %c0_i32_0 = arith.constant 0 : i32
    %c0_i32_1 = arith.constant 0 : i32
    return %c0_i32, %c0_i32_0 : i32, i32
  }
  func.func @transform_6(%arg0: i32) -> (i32, i32) {
    %c0_i32 = arith.constant 0 : i32
    %c0_i32_0 = arith.constant 0 : i32
    %c0_i32_1 = arith.constant 0 : i32
    return %c0_i32, %c0_i32_0 : i32, i32
  }
  func.func @transform_7(%arg0: i32) -> (i32, i32) {
    %c0_i32 = arith.constant 0 : i32
    %c0_i32_0 = arith.constant 0 : i32
    return %c0_i32, %arg0 : i32, i32
  }
}

</mosaic_0001>

<llo_original>
// kernel: tpu_custom_call.1
$region0: #{tpu_custom_call.1}
  #allocation0 [shape = 'u32[]', space=smem, size = 0x4, offset = 0x4, fixed_abs, tag = 'smem constant byte address 0x4 - core index']
  #allocation1 [shape = 'u32[144,128]{1,0:T(1,128)}', space=vmem, size = 0x12000, scoped, tag = 'internal scratch']
  #allocation2 [shape = 'f32[1,1]{1,0:T(1,128)S(1)}', space=vmem, size = 0x200, scoped, tag = 'scoped memory for tpu_custom_call.1']
  %s0 = inlined_call_operand.hbm [shape: f32[8,16], index: 0, kind: input, shape index: {}]
  %s1 = inlined_call_operand.hbm [shape: bf16[16,32], index: 1, kind: input, shape index: {}]
  %s2 = inlined_call_operand.vmem [shape: f32[1,32], index: 2, kind: input, shape index: {}]
  %s3 = inlined_call_operand.hbm [shape: bf16[32,32], index: 3, kind: input, shape index: {}]
  %s4 = inlined_call_operand.vmem [shape: f32[1,32], index: 4, kind: input, shape index: {}]
  %s5 = inlined_call_operand.vmem [shape: f32[1,32], index: 5, kind: input, shape index: {}]
  %s6 = inlined_call_operand.<no memory space> [shape: f32[1,1], index: 6, kind: input, shape index: {}]
  %s7 = inlined_call_operand.hbm [shape: f32[1,8], index: 7, kind: output, shape index: {}]
  %s8 = sld [smem:[#allocation0]]
  $region50: #{tpu_custom_call.1} parent=0
    _
  %s10 = ssub.s32 1, %s8
  %s11 = scalar_select 0, %s10, %s8
  %v12 = vstv %s6
  %13 = vst [vmem:[#allocation2] sm:$0x1] %v12
  $region1: #{tpu_custom_call.1} parent=0
    #allocation3 [shape = 'u8[4096]{0}', space=vmem, size = 0x1000, scoped, tag = 'input window, operand 0, single buffered']
    #allocation4 [shape = 's32[1]{0}', space=sflag, size = 0x4, scoped, tag = 'scoped memory for tpu_custom_call.1']
    #allocation5 [shape = 's32[1]{0}', space=sflag, size = 0x4, scoped, tag = 'scoped memory for tpu_custom_call.1']
    #allocation6 [shape = 'u8[4096]{0}', space=vmem, size = 0x1000, scoped, tag = 'input window, operand 1, single buffered']
    #allocation7 [shape = 's32[1]{0}', space=sflag, size = 0x4, scoped, tag = 'scoped memory for tpu_custom_call.1']
    #allocation8 [shape = 'u8[8192]{0}', space=vmem, size = 0x2000, scoped, tag = 'input window, operand 3, single buffered']
    #allocation9 [shape = 'u8[512]{0}', space=vmem, size = 0x400, scoped, tag = 'output window, operand 0, single buffered']
    %14 = vsyncpa [#allocation4], 0
    %15 = vsyncpa [#allocation7], 0
    %16 = vsyncpa [#allocation5], 0
    // Predicated region
    $region2: #{tpu_custom_call.1} parent=1 // pred_check
      _
    $region3: #{tpu_custom_call.1} parent=1 // pred_check_branch
      %18 = sbr.rel (0) target = $region5
    $region4: #{tpu_custom_call.1} parent=1 // pred_region
      %s20 = ssub.s32 128, 128
      %21 = vsyncadd [#allocation4], %s20
      %s23 = sshll.u32 [#allocation3], 4
      %s24 = int_to_ptr.vmem [resolvable:$true] %s23
      %26 = dma.hbm_to_vmem [thread:$0]  %s0, 128, %s24, [#allocation4]
    $region5: #{tpu_custom_call.1} parent=1 // pred_fallthru
      _
    // Predicated region
    $region6: #{tpu_custom_call.1} parent=1 // pred_check
      _
    $region7: #{tpu_custom_call.1} parent=1 // pred_check_branch
      %28 = sbr.rel (0) target = $region9
    $region8: #{tpu_custom_call.1} parent=1 // pred_region
      %s30 = ssub.s32 128, 128
      %31 = vsyncadd [#allocation7], %s30
      %s32 = sshll.u32 [#allocation6], 4
      %s33 = int_to_ptr.vmem [resolvable:$true] %s32
      %38 = dma.hbm_to_vmem [thread:$0]  %s1, 128, %s33, [#allocation7], 64, 64, 4
    $region9: #{tpu_custom_call.1} parent=1 // pred_fallthru
      _
    // Predicated region
    $region10: #{tpu_custom_call.1} parent=1 // pred_check
      _
    $region11: #{tpu_custom_call.1} parent=1 // pred_check_branch
      %40 = sbr.rel (0) target = $region13
    $region12: #{tpu_custom_call.1} parent=1 // pred_region
      _
    $region13: #{tpu_custom_call.1} parent=1 // pred_fallthru
      _
    // Predicated region
    $region14: #{tpu_custom_call.1} parent=1 // pred_check
      _
    $region15: #{tpu_custom_call.1} parent=1 // pred_check_branch
      %42 = sbr.rel (0) target = $region17
    $region16: #{tpu_custom_call.1} parent=1 // pred_region
      %s44 = ssub.s32 256, 256
      %45 = vsyncadd [#allocation7], %s44
      %s46 = sshll.u32 [#allocation8], 4
      %s47 = int_to_ptr.vmem [resolvable:$true] %s46
      %52 = dma.hbm_to_vmem [thread:$0]  %s3, 256, %s47, [#allocation7], 64, 64, 4
    $region17: #{tpu_custom_call.1} parent=1 // pred_fallthru
      _
    // Predicated region
    $region18: #{tpu_custom_call.1} parent=1 // pred_check
      _
    $region19: #{tpu_custom_call.1} parent=1 // pred_check_branch
      %54 = sbr.rel (0) target = $region21
    $region20: #{tpu_custom_call.1} parent=1 // pred_region
      _
    $region21: #{tpu_custom_call.1} parent=1 // pred_fallthru
      _
    // Predicated region
    $region22: #{tpu_custom_call.1} parent=1 // pred_check
      _
    $region23: #{tpu_custom_call.1} parent=1 // pred_check_branch
      %56 = sbr.rel (0) target = $region25
    $region24: #{tpu_custom_call.1} parent=1 // pred_region
      _
    $region25: #{tpu_custom_call.1} parent=1 // pred_fallthru
      _
    // Predicated region
    $region26: #{tpu_custom_call.1} parent=1 // pred_check
      _
    $region27: #{tpu_custom_call.1} parent=1 // pred_check_branch
      %58 = sbr.rel (0) target = $region29
    $region28: #{tpu_custom_call.1} parent=1 // pred_region
      _
    $region29: #{tpu_custom_call.1} parent=1 // pred_fallthru
      _
    // Predicated region
    $region30: #{tpu_custom_call.1} parent=1 // pred_check
      _
    $region31: #{tpu_custom_call.1} parent=1 // pred_check_branch
      %60 = sbr.rel (0) target = $region33
    $region32: #{tpu_custom_call.1} parent=1 // pred_region
      %61 = dma.done [#allocation4], 128
    $region33: #{tpu_custom_call.1} parent=1 // pred_fallthru
      _
    // Predicated region
    $region34: #{tpu_custom_call.1} parent=1 // pred_check
      _
    $region35: #{tpu_custom_call.1} parent=1 // pred_check_branch
      %63 = sbr.rel (0) target = $region37
    $region36: #{tpu_custom_call.1} parent=1 // pred_region
      %64 = dma.done [#allocation7], 128
    $region37: #{tpu_custom_call.1} parent=1 // pred_fallthru
      _
    // Predicated region
    $region38: #{tpu_custom_call.1} parent=1 // pred_check
      _
    $region39: #{tpu_custom_call.1} parent=1 // pred_check_branch
      %66 = sbr.rel (0) target = $region41
    $region40: #{tpu_custom_call.1} parent=1 // pred_region
      %67 = dma.done [#allocation7], 256
    $region41: #{tpu_custom_call.1} parent=1 // pred_fallthru
      _
    %v69 = vld [vmem:[#allocation3] sm:$0xff]
    %v70 = vpack.c.bf16 %v69, %v69
    %v71 = vld [vmem:[#allocation6] sm:$0xf]
    %v72 = vld [vmem:[#allocation6 + $0x4] sm:$0xf]
    %v73 = vld [vmem:[%s2] sm:$0x1]
    %v75 = vlaneseq
    %v76 = vshrl.u32 %v75, 7
    %v77 = vsub.s32 0, %v76
    %v78 = vrot.slane %v73, %v77
    %v82 = vunpack.c.l.b16 %v71
    %v83 = vunpack.c.l.b16 %v72
    %v84 = vpack.c.b16 %v83, %v82
    %vm86 = vcmask 130048
    %v88 = vsel %vm86, %v70, 0
    %90 = vmatprep.subr.bf16.mxu0 0
    %91 = vmatpush1.bf16.msra.mxu0 %v84
    %92 = vmatprep.subr.bf16.mxu0 0
    %93 = vmatpush1.bf16.msra.mxu0 0
    %94 = vmatprep.subr.bf16.mxu0 0
    %95 = vmatpush1.bf16.msra.mxu0 0
    %96 = vmatprep.subr.bf16.mxu0 0
    %97 = vmatpush1.bf16.msra.mxu0 0
    %98 = vmatprep.subr.bf16.mxu0 0
    %99 = vmatpush1.bf16.msra.mxu0 0
    %100 = vmatprep.subr.bf16.mxu0 0
    %101 = vmatpush1.bf16.msra.mxu0 0
    %102 = vmatprep.subr.bf16.mxu0 0
    %103 = vmatpush1.bf16.msra.mxu0 0
    %104 = vmatprep.subr.bf16.mxu0 0
    %105 = vmatpush1.bf16.msra.mxu0 0
    %106 = vmatprep.subr.bf16.mxu0 0
    %107 = vmatpush1.bf16.msra.mxu0 0
    %108 = vmatprep.subr.bf16.mxu0 0
    %109 = vmatpush1.bf16.msra.mxu0 0
    %110 = vmatprep.subr.bf16.mxu0 0
    %111 = vmatpush1.bf16.msra.mxu0 0
    %112 = vmatprep.subr.bf16.mxu0 0
    %113 = vmatpush1.bf16.msra.mxu0 0
    %114 = vmatprep.subr.bf16.mxu0 0
    %115 = vmatpush1.bf16.msra.mxu0 0
    %116 = vmatprep.subr.bf16.mxu0 0
    %117 = vmatpush1.bf16.msra.mxu0 0
    %118 = vmatprep.subr.bf16.mxu0 0
    %119 = vmatpush1.bf16.msra.mxu0 0
    %120 = vmatprep.subr.bf16.mxu0 0
    %121 = vmatpush1.bf16.msra.mxu0 0
    %122 = vmatprep.mubr.bf16.mxu0 0
    %123 = vmatmul.mubr.bf16.gmra.mrb[0].mxu0 %v88
    %v124 = vpop.f32.mrb[0].mxu0
    %v125 = vadd.f32 %v78, %v124
    %v126 = vpop.f32.mrb[0].mxu0
    %v127 = vpop.f32.mrb[0].mxu0
    %v128 = vpop.f32.mrb[0].mxu0
    %129 = vdwg.mxu0
    %v130 = vtanh.pop %v125
    %v131 = vpack.c.bf16 %v130, %v130
    %v132 = vld [vmem:[#allocation8] sm:$0xf]
    %v133 = vld [vmem:[#allocation8 + $0x4] sm:$0xf]
    %v134 = vld [vmem:[#allocation8 + $0x8] sm:$0xf]
    %v135 = vld [vmem:[#allocation8 + $0xc] sm:$0xf]
    %v136 = vld [vmem:[%s4] sm:$0x1]
    %v138 = vlaneseq
    %v139 = vshrl.u32 %v138, 7
    %v140 = vsub.s32 0, %v139
    %v141 = vrot.slane %v136, %v140
    %v147 = vunpack.c.l.b16 %v132
    %v148 = vunpack.c.l.b16 %v133
    %v149 = vunpack.c.l.b16 %v134
    %v150 = vunpack.c.l.b16 %v135
    %v151 = vpack.c.b16 %v148, %v147
    %v152 = vpack.c.b16 %v150, %v149
    %vm155 = vcmask 261120
    %v157 = vsel %vm155, %v131, 0
    %159 = vmatprep.subr.bf16.mxu0 0
    %160 = vmatpush1.bf16.msra.mxu0 %v151
    %161 = vmatprep.subr.bf16.mxu0 0
    %162 = vmatpush1.bf16.msra.mxu0 %v152
    %163 = vmatprep.subr.bf16.mxu0 0
    %164 = vmatpush1.bf16.msra.mxu0 0
    %165 = vmatprep.subr.bf16.mxu0 0
    %166 = vmatpush1.bf16.msra.mxu0 0
    %167 = vmatprep.subr.bf16.mxu0 0
    %168 = vmatpush1.bf16.msra.mxu0 0
    %169 = vmatprep.subr.bf16.mxu0 0
    %170 = vmatpush1.bf16.msra.mxu0 0
    %171 = vmatprep.subr.bf16.mxu0 0
    %172 = vmatpush1.bf16.msra.mxu0 0
    %173 = vmatprep.subr.bf16.mxu0 0
    %174 = vmatpush1.bf16.msra.mxu0 0
    %175 = vmatprep.subr.bf16.mxu0 0
    %176 = vmatpush1.bf16.msra.mxu0 0
    %177 = vmatprep.subr.bf16.mxu0 0
    %178 = vmatpush1.bf16.msra.mxu0 0
    %179 = vmatprep.subr.bf16.mxu0 0
    %180 = vmatpush1.bf16.msra.mxu0 0
    %181 = vmatprep.subr.bf16.mxu0 0
    %182 = vmatpush1.bf16.msra.mxu0 0
    %183 = vmatprep.subr.bf16.mxu0 0
    %184 = vmatpush1.bf16.msra.mxu0 0
    %185 = vmatprep.subr.bf16.mxu0 0
    %186 = vmatpush1.bf16.msra.mxu0 0
    %187 = vmatprep.subr.bf16.mxu0 0
    %188 = vmatpush1.bf16.msra.mxu0 0
    %189 = vmatprep.subr.bf16.mxu0 0
    %190 = vmatpush1.bf16.msra.mxu0 0
    %191 = vmatprep.mubr.bf16.mxu0 0
    %192 = vmatmul.mubr.bf16.gmra.mrb[0].mxu0 %v157
    %v193 = vpop.f32.mrb[0].mxu0
    %v194 = vadd.f32 %v141, %v193
    %v195 = vpop.f32.mrb[0].mxu0
    %v196 = vpop.f32.mrb[0].mxu0
    %v197 = vpop.f32.mrb[0].mxu0
    %198 = vdwg.mxu0
    %v199 = vtanh.pop %v194
    %v200 = vld [vmem:[%s5] sm:$0x1]
    %v202 = vlaneseq
    %v203 = vshrl.u32 %v202, 7
    %v204 = vsub.s32 0, %v203
    %v205 = vrot.slane %v200, %v204
    %v207 = vmul.f32 %v199, %v205
    %v208 = vsel %vm155, %v207, 0.0
    %209 = vadd.xlane.f32.xlu0 %v208
    %v210 = vpop.xlane.xlu0 %209
    %v211 = vld [vmem:[#allocation2] sm:$0x1]
    %213 = vset.pattern.permute.xlu0 0
    %214 = vperm.xlu0 %213, %v211
    %v215 = vpop.permute.xlu0 %214
    %v217 = vlaneseq
    %v218 = vshrl.u32 %v217, 7
    %v219 = vsub.s32 0, %v218
    %v220 = vrot.slane %v215, %v219
    %v221 = vadd.f32 %v210, %v220
    %v223 = vlaneseq
    %v224 = vand.u32 %v223, 127
    %v225 = vlaneseq
    %v226 = vshrl.u32 %v225, 7
    %v227 = vsub.s32 %v224, %v226
    %v228 = vrot.slane %v221, %v227
    %vm230 = vcmask 57344
    %231 = vst.msk [vmem:[#allocation9] sm:$0x1] %vm230, %v228
    // Predicated region
    $region42: #{tpu_custom_call.1} parent=1 // pred_check
      _
    $region43: #{tpu_custom_call.1} parent=1 // pred_check_branch
      %233 = sbr.rel (0) target = $region45
    $region44: #{tpu_custom_call.1} parent=1 // pred_region
      %s235 = ssub.s32 16, 16
      %236 = vsyncadd [#allocation5], %s235
      %s238 = sshll.u32 [#allocation9], 4
      %s239 = int_to_ptr.vmem [resolvable:$true] %s238
      %241 = dma.vmem_to_hbm [thread:$0]  %s239, 16, %s7, [#allocation5]
    $region45: #{tpu_custom_call.1} parent=1 // pred_fallthru
      _
    // Predicated region
    $region46: #{tpu_custom_call.1} parent=1 // pred_check
      _
    $region47: #{tpu_custom_call.1} parent=1 // pred_check_branch
      %243 = sbr.rel (0) target = $region49
    $region48: #{tpu_custom_call.1} parent=1 // pred_region
      %244 = dma.done [#allocation5], 16
    $region49: #{tpu_custom_call.1} parent=1 // pred_fallthru
      _
    %245 = vsyncpa [#allocation4], 1
    %246 = vsyncpa [#allocation7], 1
    %247 = vsyncpa [#allocation5], 1

</llo_original>
